<compile_context>
chip_gen: v6e
topology: v6e:2x2x1
jax: 0.10.0
libtpu: 0.0.40
codegen_flags: <defaults>
</compile_context>

<pallas_src>
import functools

import jax
import jax.numpy as jnp
from jax.experimental import pallas as pl
from jax.experimental.pallas import tpu as pltpu

_LANES = 128
_MAX_BLOCK_ROWS = 4096   # 4096x128 f32 = 2 MiB per input per buffer
_SMOOTH = 1e-6


def _num_tensorcores():
    """2 on multi-TensorCore chips (v7x); 1 elsewhere.  Safe fallback = 1."""
    try:
        kind = jax.devices()[0].device_kind.lower()
    except Exception:
        return 1
    return 2 if ("v7" in kind or "tpu7" in kind) else 1


def _round_up(x, m):
    return ((x + m - 1) // m) * m


def _bce_partial_kernel(yt_ref, yp_ref, out_ref, acc_ref, *,
                        steps, total_steps, block_rows,
                        valid_rows_last, need_row_mask):
    c = pl.program_id(0)   # core / partial-sum index ("parallel")
    i = pl.program_id(1)   # sequential reduction step ("arbitrary")
    b = c * steps + i      # global block index

    @pl.when(i == 0)
    def _():
        acc_ref[...] = jnp.zeros_like(acc_ref)

    def term():
        yt = yt_ref[...].astype(jnp.float32)
        yp = yp_ref[...].astype(jnp.float32)
        # TODO(synk): if y_true were guaranteed binary, the two logs could be
        # fused into one (halves EUP pressure); kept general to match PyTorch.
        return yt * jnp.log(yp + _SMOOTH) + (1.0 - yt) * jnp.log(1.0 - yp + _SMOOTH)

    # Steady state: unmasked accumulation (no iota / compare / select).
    steady_limit = total_steps - 1 if need_row_mask else total_steps

    @pl.when(b < steady_limit)
    def _():
        acc_ref[...] += term()

    if need_row_mask:
        # Only the single boundary block pays for the mask.  Row-granularity
        # compare (no full linear index) -> no int32 overflow for huge inputs.
        @pl.when(b == total_steps - 1)
        def _():
            row = jax.lax.broadcasted_iota(jnp.int32, (block_rows, _LANES), 0)
            acc_ref[...] += jnp.where(row < valid_rows_last, term(), 0.0)

    @pl.when(i == steps - 1)
    def _():
        # Single expensive cross-lane/sublane reduction, once per core.
        out_ref[0, 0] = jnp.sum(acc_ref[...])


def _bulk_sum(yt2, yp2):
    """Sum of the BCE terms over a (rows, 128) slab via the Pallas kernel."""
    rows = yt2.shape[0]

    if rows < 8:
        block_rows = rows   # block == full array dim is allowed
    else:
        block_rows = min(_MAX_BLOCK_ROWS, _round_up(rows, 8))
    total_steps = -(-rows // block_rows)

    cores = _num_tensorcores() if total_steps >= 2 else 1
    steps = -(-total_steps // cores)

    need_row_mask = (rows % block_rows) != 0
    valid_rows_last = rows - (total_steps - 1) * block_rows

    if cores * steps == total_steps:
        def in_map(c, i):
            return (c * steps + i, 0)
    else:
        # Clamp duplicated trailing blocks in-bounds; the kernel skips them.
        def in_map(c, i):
            return (jnp.minimum(c * steps + i, total_steps - 1), 0)

    in_block = pl.BlockSpec((block_rows, _LANES), in_map)

    kernel = functools.partial(
        _bce_partial_kernel,
        steps=steps, total_steps=total_steps, block_rows=block_rows,
        valid_rows_last=valid_rows_last, need_row_mask=need_row_mask,
    )

    n_bulk = rows * _LANES
    partials = pl.pallas_call(
        kernel,
        out_shape=jax.ShapeDtypeStruct((cores, 1), jnp.float32),
        grid_spec=pltpu.PrefetchScalarGridSpec(
            num_scalar_prefetch=0,
            grid=(cores, steps),
            in_specs=[in_block, in_block],
            out_specs=pl.BlockSpec(
                (1, 1), lambda c, i: (c, 0), memory_space=pltpu.SMEM
            ),
            scratch_shapes=[pltpu.VMEM((block_rows, _LANES), jnp.float32)],
        ),
        compiler_params=pltpu.CompilerParams(
            dimension_semantics=("parallel", "arbitrary"),
            vmem_limit_bytes=32 * 1024 * 1024,
        ),
        cost_estimate=pl.CostEstimate(
            flops=8 * n_bulk,
            transcendentals=2 * n_bulk,
            bytes_accessed=8 * n_bulk,
        ),
    )(yt2, yp2)

    return jnp.sum(partials)


def cross_loss(y_true, y_pred):
    """Pallas equivalent of the PyTorch cross_loss.forward (scalar f32)."""
    assert y_true.shape == y_pred.shape
    n = int(y_true.size)
    assert n > 0

    yt = jnp.ravel(y_true)
    yp = jnp.ravel(y_pred)

    rows = n // _LANES      # number of full 128-lane rows
    rem = n % _LANES        # ragged tail (< 128 elements)
    n_bulk = rows * _LANES

    pieces = []
    if rows > 0:
        if rem:
            # TODO(synk): prefix slice copies n_bulk elements for ragged n; a
            # fully zero-copy ragged path would need a manual-DMA 1-D kernel.
            yt_bulk = jax.lax.slice(yt, (0,), (n_bulk,))
            yp_bulk = jax.lax.slice(yp, (0,), (n_bulk,))
        else:
            # No padding, no extra HBM copy in the 128-aligned common case.
            yt_bulk, yp_bulk = yt, yp
        pieces.append(_bulk_sum(yt_bulk.reshape(rows, _LANES),
                                yp_bulk.reshape(rows, _LANES)))
    if rem:
        # Tiny ragged tail handled in plain jnp (copies only `rem` elements).
        yt_t = jax.lax.slice(yt, (n_bulk,), (n,)).astype(jnp.float32)
        yp_t = jax.lax.slice(yp, (n_bulk,), (n,)).astype(jnp.float32)
        pieces.append(jnp.sum(
            yt_t * jnp.log(yp_t + _SMOOTH)
            + (1.0 - yt_t) * jnp.log(1.0 - yp_t + _SMOOTH)))

    total = pieces[0]
    for p in pieces[1:]:
        total = total + p

    # Negate and take the mean over the ORIGINAL element count.
    return -total * (1.0 / float(n))


def _reference(y_true, y_pred):
    term = y_true * jnp.log(y_pred + _SMOOTH) + (1.0 - y_true) * jnp.log(
        1.0 - y_pred + _SMOOTH
    )
    return -jnp.mean(term)


if __name__ == "__main__":
    key = jax.random.PRNGKey(0)
    k1, k2 = jax.random.split(key)
    shape = (2, 4, 16, 16)  # NCHW-style small example
    # y_true in {0, 1}, y_pred in (0, 1) like sigmoid outputs
    y_true = (jax.random.uniform(k1, shape) > 0.5).astype(jnp.float32)
    y_pred = jax.random.uniform(k2, shape, minval=0.01, maxval=0.99).astype(
        jnp.float32
    )

    loss = cross_loss(y_true, y_pred)
    loss = jax.block_until_ready(loss)

    ref = _reference(y_true, y_pred)
    assert jnp.allclose(loss, ref, rtol=1e-5, atol=1e-6), (loss, ref)
    print("KERNEL_OK")
</pallas_src>

<mosaic_0001>
module attributes {stable_mosaic.version = 11 : i64} {
  func.func @_bce_partial_kernel(%arg0: i32, %arg1: i32, %arg2: memref<16x128xf32, #tpu.memory_space<vmem>>, %arg3: memref<16x128xf32, #tpu.memory_space<vmem>>, %arg4: memref<1x1xf32, #tpu.memory_space<smem>>, %arg5: memref<16x128xf32, #tpu.memory_space<vmem>>) attributes {dimension_semantics = [#tpu.dimension_semantics<parallel>, #tpu.dimension_semantics<arbitrary>], iteration_bounds = array<i64: 1, 1>, scalar_prefetch = 0 : i64, scratch_operands = 1 : i64, tpu.core_type = #tpu.core_type<tc>, window_params = [{transform_indices = @transform_0, window_bounds = array<i64: 16, 128>}, {transform_indices = @transform_1, window_bounds = array<i64: 16, 128>}, {transform_indices = @transform_2, window_bounds = array<i64: 1, 1>}]} {
    %c1_i32 = arith.constant 1 : i32
    %0 = arith.muli %arg0, %c1_i32 : i32
    %1 = arith.addi %0, %arg1 : i32
    %c0_i32 = arith.constant 0 : i32
    %2 = arith.cmpi eq, %arg1, %c0_i32 : i32
    %3 = arith.extui %2 : i1 to i32
    %c0_i32_0 = arith.constant 0 : i32
    %4 = arith.cmpi ne, %3, %c0_i32_0 : i32
    scf.if %4 {
      %cst = arith.constant 0.000000e+00 : f32
      %11 = vector.broadcast %cst : f32 to vector<16x128xf32>
      %c0 = arith.constant 0 : index
      %c0_5 = arith.constant 0 : index
      %12 = vector.load %arg5[%c0, %c0_5] : memref<16x128xf32, #tpu.memory_space<vmem>>, vector<16x128xf32>
      tpu.vector_store %arg5[%c0, %c0_5], %11 {strides = array<i32>} : memref<16x128xf32, #tpu.memory_space<vmem>>, vector<16x128xf32>,
    } else {
    }
    %c1_i32_1 = arith.constant 1 : i32
    %5 = arith.cmpi slt, %1, %c1_i32_1 : i32
    %6 = arith.extui %5 : i1 to i32
    %c0_i32_2 = arith.constant 0 : i32
    %7 = arith.cmpi ne, %6, %c0_i32_2 : i32
    scf.if %7 {
      %c0 = arith.constant 0 : index
      %c0_5 = arith.constant 0 : index
      %11 = vector.load %arg5[%c0, %c0_5] : memref<16x128xf32, #tpu.memory_space<vmem>>, vector<16x128xf32>
      %c0_6 = arith.constant 0 : index
      %c0_7 = arith.constant 0 : index
      %12 = vector.load %arg2[%c0_6, %c0_7] : memref<16x128xf32, #tpu.memory_space<vmem>>, vector<16x128xf32>
      %c0_8 = arith.constant 0 : index
      %c0_9 = arith.constant 0 : index
      %13 = vector.load %arg3[%c0_8, %c0_9] : memref<16x128xf32, #tpu.memory_space<vmem>>, vector<16x128xf32>
      %cst = arith.constant 9.99999997E-7 : f32
      %14 = vector.broadcast %cst : f32 to vector<16x128xf32>
      %15 = arith.addf %13, %14 : vector<16x128xf32>
      %16 = math.log %15 : vector<16x128xf32>
      %17 = arith.mulf %12, %16 : vector<16x128xf32>
      %cst_10 = arith.constant 1.000000e+00 : f32
      %18 = vector.broadcast %cst_10 : f32 to vector<16x128xf32>
      %19 = arith.subf %18, %12 : vector<16x128xf32>
      %cst_11 = arith.constant 1.000000e+00 : f32
      %20 = vector.broadcast %cst_11 : f32 to vector<16x128xf32>
      %21 = arith.subf %20, %13 : vector<16x128xf32>
      %cst_12 = arith.constant 9.99999997E-7 : f32
      %22 = vector.broadcast %cst_12 : f32 to vector<16x128xf32>
      %23 = arith.addf %21, %22 : vector<16x128xf32>
      %24 = math.log %23 : vector<16x128xf32>
      %25 = arith.mulf %19, %24 : vector<16x128xf32>
      %26 = arith.addf %17, %25 : vector<16x128xf32>
      %27 = arith.addf %11, %26 : vector<16x128xf32>
      %c0_13 = arith.constant 0 : index
      %c0_14 = arith.constant 0 : index
      %28 = vector.load %arg5[%c0_13, %c0_14] : memref<16x128xf32, #tpu.memory_space<vmem>>, vector<16x128xf32>
      tpu.vector_store %arg5[%c0_13, %c0_14], %27 {strides = array<i32>} : memref<16x128xf32, #tpu.memory_space<vmem>>, vector<16x128xf32>,
    } else {
    }
    %c0_i32_3 = arith.constant 0 : i32
    %8 = arith.cmpi eq, %arg1, %c0_i32_3 : i32
    %9 = arith.extui %8 : i1 to i32
    %c0_i32_4 = arith.constant 0 : i32
    %10 = arith.cmpi ne, %9, %c0_i32_4 : i32
    scf.if %10 {
      %c0 = arith.constant 0 : index
      %c0_5 = arith.constant 0 : index
      %11 = vector.load %arg5[%c0, %c0_5] : memref<16x128xf32, #tpu.memory_space<vmem>>, vector<16x128xf32>
      %12 = vector.shape_cast %11 : vector<16x128xf32> to vector<1x16x128xf32>
      %cst = arith.constant dense<0.000000e+00> : vector<1xf32>
      %13 = vector.multi_reduction <add>, %12, %cst [1, 2] : vector<1x16x128xf32> to vector<1xf32>
      %14 = vector.shape_cast %13 : vector<1xf32> to vector<1x1x1xf32>
      %15 = vector.extract %14[0, 0, 0] : f32 from vector<1x1x1xf32>
      %c0_6 = arith.constant 0 : index
      %c0_7 = arith.constant 0 : index
      %16 = memref.load %arg4[%c0_6, %c0_7] : memref<1x1xf32, #tpu.memory_space<smem>>
      memref.store %15, %arg4[%c0_6, %c0_7] : memref<1x1xf32, #tpu.memory_space<smem>>
    } else {
    }
    return
  }
  func.func @transform_0(%arg0: i32, %arg1: i32) -> (i32, i32) {
    %c1_i32 = arith.constant 1 : i32
    %0 = arith.muli %arg0, %c1_i32 : i32
    %1 = arith.addi %0, %arg1 : i32
    %c0_i32 = arith.constant 0 : i32
    %c0_i32_0 = arith.constant 0 : i32
    return %1, %c0_i32 : i32, i32
  }
  func.func @transform_1(%arg0: i32, %arg1: i32) -> (i32, i32) {
    %c1_i32 = arith.constant 1 : i32
    %0 = arith.muli %arg0, %c1_i32 : i32
    %1 = arith.addi %0, %arg1 : i32
    %c0_i32 = arith.constant 0 : i32
    %c0_i32_0 = arith.constant 0 : i32
    return %1, %c0_i32 : i32, i32
  }
  func.func @transform_2(%arg0: i32, %arg1: i32) -> (i32, i32) {
    %c0_i32 = arith.constant 0 : i32
    %c0_i32_0 = arith.constant 0 : i32
    return %arg0, %c0_i32 : i32, i32
  }
}

</mosaic_0001>

<llo_original>
// kernel: tpu_custom_call.1
$region0: #{tpu_custom_call.1}
  #allocation0 [shape = 'u32[]', space=smem, size = 0x4, offset = 0x4, fixed_abs, tag = 'smem constant byte address 0x4 - core index']
  #allocation1 [shape = 'u32[144,128]{1,0:T(1,128)}', space=vmem, size = 0x12000, scoped, tag = 'internal scratch']
  #allocation2 [shape = 'f32[16,128]{1,0:T(8,128)}', space=vmem, size = 0x2000, scoped, tag = 'scratch operand']
  %s0 = inlined_call_operand.hbm [shape: f32[16,128], index: 0, kind: input, shape index: {}]
  %s1 = inlined_call_operand.hbm [shape: f32[16,128], index: 1, kind: input, shape index: {}]
  %s2 = inlined_call_operand.hbm [shape: f32[1,1], index: 2, kind: output, shape index: {}]
  %s3 = sld [smem:[#allocation0]]
  $region38: #{tpu_custom_call.1} parent=0
    _
  %s5 = ssub.s32 1, %s3
  %s6 = scalar_select 0, %s5, %s3
  $region1: #{tpu_custom_call.1} parent=0
    #allocation3 [shape = 'u8[8192]{0}', space=vmem, size = 0x2000, scoped, tag = 'input window, operand 0, single buffered']
    #allocation4 [shape = 's32[1]{0}', space=sflag, size = 0x4, scoped, tag = 'scoped memory for tpu_custom_call.1']
    #allocation5 [shape = 's32[1]{0}', space=sflag, size = 0x4, scoped, tag = 'scoped memory for tpu_custom_call.1']
    #allocation6 [shape = 'u8[8192]{0}', space=vmem, size = 0x2000, scoped, tag = 'input window, operand 1, single buffered']
    #allocation7 [shape = 's32[1]{0}', space=sflag, size = 0x4, scoped, tag = 'scoped memory for tpu_custom_call.1']
    #allocation8 [shape = 'u8[512]{0}', space=smem, size = 0x200, scoped, tag = 'output window, operand 0, single buffered']
    %7 = vsyncpa [#allocation4], 0
    %8 = vsyncpa [#allocation7], 0
    %9 = vsyncpa [#allocation5], 0
    // Predicated region
    $region2: #{tpu_custom_call.1} parent=1 // pred_check
      _
    $region3: #{tpu_custom_call.1} parent=1 // pred_check_branch
      %11 = sbr.rel (0) target = $region5
    $region4: #{tpu_custom_call.1} parent=1 // pred_region
      %s12 = sadd.s32 0, 0
      %s13 = smul.u32 2, %s12
      %s15 = ssub.s32 256, 256
      %16 = vsyncadd [#allocation4], %s15
      %s17 = smul.addr %s13, 128
      %s18 = scalar_lea.hbm %s0, %s17
      %s19 = sshll.u32 [#allocation3], 4
      %s20 = int_to_ptr.vmem [resolvable:$true] %s19
      %25 = dma.hbm_to_vmem [thread:$0]  %s18, 256, %s20, [#allocation4], 128, 128, 8
    $region5: #{tpu_custom_call.1} parent=1 // pred_fallthru
      _
    // Predicated region
    $region6: #{tpu_custom_call.1} parent=1 // pred_check
      _
    $region7: #{tpu_custom_call.1} parent=1 // pred_check_branch
      %27 = sbr.rel (0) target = $region9
    $region8: #{tpu_custom_call.1} parent=1 // pred_region
      %s28 = sadd.s32 0, 0
      %s29 = smul.u32 2, %s28
      %s31 = ssub.s32 256, 256
      %32 = vsyncadd [#allocation7], %s31
      %s33 = smul.addr %s29, 128
      %s34 = scalar_lea.hbm %s1, %s33
      %s35 = sshll.u32 [#allocation6], 4
      %s36 = int_to_ptr.vmem [resolvable:$true] %s35
      %41 = dma.hbm_to_vmem [thread:$0]  %s34, 256, %s36, [#allocation7], 128, 128, 8
    $region9: #{tpu_custom_call.1} parent=1 // pred_fallthru
      _
    // Predicated region
    $region10: #{tpu_custom_call.1} parent=1 // pred_check
      _
    $region11: #{tpu_custom_call.1} parent=1 // pred_check_branch
      %43 = sbr.rel (0) target = $region13
    $region12: #{tpu_custom_call.1} parent=1 // pred_region
      %44 = dma.done [#allocation4], 256
    $region13: #{tpu_custom_call.1} parent=1 // pred_fallthru
      _
    // Predicated region
    $region14: #{tpu_custom_call.1} parent=1 // pred_check
      _
    $region15: #{tpu_custom_call.1} parent=1 // pred_check_branch
      %46 = sbr.rel (0) target = $region17
    $region16: #{tpu_custom_call.1} parent=1 // pred_region
      %47 = dma.done [#allocation7], 256
    $region17: #{tpu_custom_call.1} parent=1 // pred_fallthru
      _
    %s48 = sadd.s32 0, 0
    %s49 = smul.u32 2, %s48
    %s50 = sadd.s32 0, 0
    %s51 = smul.u32 2, %s50
    %s52 = sadd.s32 0, 0
    %p53 = scmp.eq.s32.totalorder 0, 0
    // Predicated region
    $region18: #{tpu_custom_call.1} parent=1 // pred_check
      %p54 = pneg %p53
    $region19: #{tpu_custom_call.1} parent=1 // pred_check_branch
      %56 = sbr.rel (%p54) target = $region21
    $region20: #{tpu_custom_call.1} parent=1 // pred_region
      %57 = vst [vmem:[#allocation2] sm:$0xff] 0.0
      %58 = vst [vmem:[#allocation2 + $0x8] sm:$0xff] 0.0
    $region21: #{tpu_custom_call.1} parent=1 // pred_fallthru
      _
    %p59 = scmp.lt.s32.totalorder %s52, 1
    // Predicated region
    $region22: #{tpu_custom_call.1} parent=1 // pred_check
      %p60 = pneg %p59
    $region23: #{tpu_custom_call.1} parent=1 // pred_check_branch
      %62 = sbr.rel (%p60) target = $region25
    $region24: #{tpu_custom_call.1} parent=1 // pred_region
      %v63 = vld [vmem:[#allocation2] sm:$0xff]
      %v64 = vld [vmem:[#allocation2 + $0x8] sm:$0xff]
      %v65 = vld [vmem:[#allocation3] sm:$0xff]
      %v66 = vld [vmem:[#allocation3 + $0x8] sm:$0xff]
      %v67 = vld [vmem:[#allocation6] sm:$0xff]
      %v68 = vld [vmem:[#allocation6 + $0x8] sm:$0xff]
      %v69 = vadd.f32 %v67, 1e-06
      %v70 = vadd.f32 %v68, 1e-06
      %v71 = vlog2.pop %v69
      %v72 = vmul.f32 %v71, 0.6931472
      %v73 = vlog2.pop %v70
      %v74 = vmul.f32 %v73, 0.6931472
      %v75 = vmul.f32 %v65, %v72
      %v76 = vmul.f32 %v66, %v74
      %v77 = vsub.f32 1.0, %v65
      %v78 = vsub.f32 1.0, %v66
      %v79 = vsub.f32 1.0, %v67
      %v80 = vsub.f32 1.0, %v68
      %v81 = vadd.f32 %v79, 1e-06
      %v82 = vadd.f32 %v80, 1e-06
      %v83 = vlog2.pop %v81
      %v84 = vmul.f32 %v83, 0.6931472
      %v85 = vlog2.pop %v82
      %v86 = vmul.f32 %v85, 0.6931472
      %v87 = vmul.f32 %v77, %v84
      %v88 = vmul.f32 %v78, %v86
      %v89 = vadd.f32 %v75, %v87
      %v90 = vadd.f32 %v76, %v88
      %v91 = vadd.f32 %v63, %v89
      %v92 = vadd.f32 %v64, %v90
      %93 = vst [vmem:[#allocation2] sm:$0xff] %v91
      %94 = vst [vmem:[#allocation2 + $0x8] sm:$0xff] %v92
    $region25: #{tpu_custom_call.1} parent=1 // pred_fallthru
      _
    // Predicated region
    $region26: #{tpu_custom_call.1} parent=1 // pred_check
      %p95 = pneg %p53
    $region27: #{tpu_custom_call.1} parent=1 // pred_check_branch
      %97 = sbr.rel (%p95) target = $region29
    $region28: #{tpu_custom_call.1} parent=1 // pred_region
      %v98 = vld [vmem:[#allocation2] sm:$0xff]
      %v99 = vld [vmem:[#allocation2 + $0x8] sm:$0xff]
      %v100 = vadd.f32 %v98, %v99
      %101 = vadd.xlane.f32.xlu0 %v100
      %v102 = vpop.xlane.xlu0 %101
      %v103 = vrot.slane %v102, 4
      %v104 = vadd.f32 %v102, %v103
      %v105 = vrot.slane %v104, 2
      %v106 = vadd.f32 %v104, %v105
      %v107 = vrot.slane %v106, 1
      %v108 = vadd.f32 %v106, %v107
      %s109 = vtos %v108
      %s110 = scalar_lea.smem [#allocation8], 0
      %111 = sst [smem:[%s110]] %s109
    $region29: #{tpu_custom_call.1} parent=1 // pred_fallthru
      _
    // Predicated region
    $region30: #{tpu_custom_call.1} parent=1 // pred_check
      _
    $region31: #{tpu_custom_call.1} parent=1 // pred_check_branch
      %113 = sbr.rel (0) target = $region33
    $region32: #{tpu_custom_call.1} parent=1 // pred_region
      %s115 = ssub.s32 16, 16
      %116 = vsyncadd [#allocation5], %s115
      %119 = dma.smem_to_hbm [#allocation8], 16, %s2, [#allocation5]
    $region33: #{tpu_custom_call.1} parent=1 // pred_fallthru
      _
    // Predicated region
    $region34: #{tpu_custom_call.1} parent=1 // pred_check
      _
    $region35: #{tpu_custom_call.1} parent=1 // pred_check_branch
      %121 = sbr.rel (0) target = $region37
    $region36: #{tpu_custom_call.1} parent=1 // pred_region
      %122 = dma.done [#allocation5], 16
    $region37: #{tpu_custom_call.1} parent=1 // pred_fallthru
      _
    %123 = sfence
    %124 = vsyncpa [#allocation4], 1
    %125 = vsyncpa [#allocation7], 1
    %126 = vsyncpa [#allocation5], 1

</llo_original>
